<compile_context>
chip_gen: v5e
topology: v5e:2x2
jax: 0.10.0
libtpu: 0.0.40
codegen_flags: <defaults>
</compile_context>

<pallas_src>
import functools

import jax
import jax.numpy as jnp
from jax.experimental import pallas as pl
from jax.experimental.pallas import tpu as pltpu


# ----------------------------- kernels -------------------------------------


def _fused_train_kernel(x_ref, w_ref, b_ref, o_ref, mean_ref, var_ref, *, eps):
    """mix == 1.0 training path: output independent of the accumulator."""
    x = x_ref[...].astype(jnp.float32)
    m = jnp.mean(x, axis=-1, keepdims=True)             # batch.mean(-1, keepdim=True)
    d = x - m
    v = jnp.mean(d * d, axis=-1, keepdims=True)         # var(-1, unbiased=False)
    y = d * jax.lax.rsqrt(v + eps)                       # EUP rsqrt, frees VALU slots
    o_ref[...] = (y * w_ref[...] + b_ref[...]).astype(o_ref.dtype)
    mean_ref[...] = m                                    # only needed for accumulator
    var_ref[...] = v


def _stats_kernel(x_ref, mean_ref, var_ref):
    x = x_ref[...].astype(jnp.float32)
    m = jnp.mean(x, axis=-1, keepdims=True)
    d = x - m
    v = jnp.mean(d * d, axis=-1, keepdims=True)
    mean_ref[...] = m
    var_ref[...] = v


def _norm_lerp_kernel(x_ref, mean_ref, var_ref, w_ref, b_ref, scal_ref, o_ref, *, eps):
    acc_mean = scal_ref[0]
    acc_var = scal_ref[1]
    mix = scal_ref[2]
    # torch.lerp(a, b, mix) = a + mix * (b - a)
    m = acc_mean + mix * (mean_ref[...] - acc_mean)
    v = acc_var + mix * (var_ref[...] - acc_var)
    x = x_ref[...].astype(jnp.float32)
    y = (x - m) * jax.lax.rsqrt(v + eps)
    o_ref[...] = (y * w_ref[...] + b_ref[...]).astype(o_ref.dtype)


def _affine_kernel(x_ref, scale_ref, shift_ref, o_ref):
    """Eval / converged path: pure per-channel scale & shift."""
    x = x_ref[...].astype(jnp.float32)
    o_ref[...] = (x * scale_ref[...] + shift_ref[...]).astype(o_ref.dtype)


# --------------------------- tiling / params ---------------------------------


def _round_up(x, m):
    return (x + m - 1) // m * m


def _vmem_capacity_bytes():
    try:
        info = pltpu.get_tpu_info()
        cap = getattr(info, "vmem_capacity_bytes", None)
        if cap:
            return int(cap)
    except Exception:
        pass
    return 64 << 20  # conservative (v7x-sized) default


def _plan_tiling(rows, H, in_dtype, out_dtype):
    """Pick (tile_rows, grid, padded_rows, vmem_limit_bytes).

    Tile is the largest multiple-of-8 row count such that the double-buffered
    (x-in + out) blocks stay well under the scoped VMEM limit; limit is set
    per-generation (64 MiB on 128-MiB parts, 32 MiB on the 64-MiB v7x part).
    """
    cap = _vmem_capacity_bytes()
    vmem_limit = min(cap // 2, 64 << 20)
    in_b = jnp.dtype(in_dtype).itemsize
    out_b = jnp.dtype(out_dtype).itemsize
    bytes_per_row_big = H * (in_b + out_b)              # x block + out block, per row
    # keep 2x-double-buffered big operands <= vmem_limit / 2 (headroom for the rest)
    target_rows = max(8, ((vmem_limit // 4) // bytes_per_row_big) // 8 * 8)

    padded8 = _round_up(rows, 8)
    if padded8 <= target_rows:
        return padded8, 1, padded8, vmem_limit
    grid = pl.cdiv(padded8, target_rows)
    tile = _round_up(pl.cdiv(padded8, grid), 8)
    return tile, grid, tile * grid, vmem_limit


def _cparams(vmem_limit):
    return pltpu.CompilerParams(
        dimension_semantics=("parallel",),              # megacore-shard the rows axis
        vmem_limit_bytes=int(vmem_limit))


# --------------------------- forward (glue) ----------------------------------


def layer2nonorm_forward(x, weight, bias, accumulator, *, eps, mix, delta, training):
    orig_shape = x.shape
    H = orig_shape[-1]
    rows = 1
    for d in orig_shape[:-1]:
        rows *= d
    out_dtype = x.dtype
    xf = x.reshape(rows, H)                              # native dtype, no f32 copy

    tile, grid, padded, vmem_limit = _plan_tiling(rows, H, x.dtype, out_dtype)
    if padded != rows:
        # zero-padded rows contribute exactly 0 to the row-mean / row-var sums
        xf = jnp.pad(xf, ((0, padded - rows), (0, 0)))

    acc = accumulator.astype(jnp.float32)
    w2 = weight.reshape(1, H).astype(jnp.float32)
    b2 = bias.reshape(1, H).astype(jnp.float32)

    x_spec = pl.BlockSpec((tile, H), lambda i: (i, 0))
    col_spec = pl.BlockSpec((tile, 1), lambda i: (i, 0))
    wb_spec = pl.BlockSpec((1, H), lambda i: (0, 0))
    smem_spec = pl.BlockSpec(memory_space=pltpu.MemorySpace.SMEM)
    cparams = _cparams(vmem_limit)

    if mix == 0.0 and delta == 1.0:
        # Eval / converged path: stats come purely from the accumulator, so the
        # whole op collapses to a per-channel affine (same algebra as .compile()).
        # TODO(synk): matches torch semantics incl. 0/0 -> NaN on an untrained accumulator.
        acc_mean = acc[0] / acc[2]
        acc_var = acc[1] / acc[2]
        inv = jax.lax.rsqrt(acc_var + jnp.float32(eps))
        scale = w2 * inv
        shift = b2 - acc_mean * inv * w2
        out = pl.pallas_call(
            _affine_kernel,
            out_shape=jax.ShapeDtypeStruct((padded, H), out_dtype),
            grid_spec=pltpu.PrefetchScalarGridSpec(
                num_scalar_prefetch=0, grid=(grid,),
                in_specs=[x_spec, wb_spec, wb_spec],
                out_specs=x_spec),
            compiler_params=cparams,
        )(xf, scale, shift)

    elif training and mix == 1.0:
        # Training warm-start: output does not depend on the accumulator, so
        # stats + normalize + affine fuse into a single pass over x.
        kernel = functools.partial(_fused_train_kernel, eps=eps)
        out, row_mean, row_var = pl.pallas_call(
            kernel,
            out_shape=(jax.ShapeDtypeStruct((padded, H), out_dtype),
                       jax.ShapeDtypeStruct((padded, 1), jnp.float32),
                       jax.ShapeDtypeStruct((padded, 1), jnp.float32)),
            grid_spec=pltpu.PrefetchScalarGridSpec(
                num_scalar_prefetch=0, grid=(grid,),
                in_specs=[x_spec, wb_spec, wb_spec],
                out_specs=[x_spec, col_spec, col_spec]),
            compiler_params=cparams,
        )(xf, w2, b2)
        # zero-padded rows contribute 0 to the sums; divide by the real row count
        new_acc = jnp.stack([jnp.sum(row_mean) / rows, jnp.sum(row_var) / rows,
                             jnp.float32(1.0)])
        # torch.lerp(new_acc, accumulator, delta)
        acc = new_acc + delta * (acc - new_acc)

    else:
        # General path (0 < mix < 1): the normalize needs the *global*
        # accumulator -> two passes (stats reduction, then lerp-normalize).
        row_mean, row_var = pl.pallas_call(
            _stats_kernel,
            out_shape=(jax.ShapeDtypeStruct((padded, 1), jnp.float32),
                       jax.ShapeDtypeStruct((padded, 1), jnp.float32)),
            grid_spec=pltpu.PrefetchScalarGridSpec(
                num_scalar_prefetch=0, grid=(grid,),
                in_specs=[x_spec],
                out_specs=[col_spec, col_spec]),
            compiler_params=cparams,
        )(xf)
        if training:
            new_acc = jnp.stack([jnp.sum(row_mean) / rows, jnp.sum(row_var) / rows,
                                 jnp.float32(1.0)])
            acc = new_acc + delta * (acc - new_acc)
        acc_mean = acc[0] / acc[2]
        acc_var = acc[1] / acc[2]
        scalars = jnp.stack([acc_mean, acc_var, jnp.float32(mix)]).astype(jnp.float32)
        kernel = functools.partial(_norm_lerp_kernel, eps=eps)
        out = pl.pallas_call(
            kernel,
            out_shape=jax.ShapeDtypeStruct((padded, H), out_dtype),
            grid_spec=pltpu.PrefetchScalarGridSpec(
                num_scalar_prefetch=0, grid=(grid,),
                in_specs=[x_spec, col_spec, col_spec, wb_spec, wb_spec, smem_spec],
                out_specs=x_spec),
            compiler_params=cparams,
        )(xf, row_mean, row_var, w2, b2, scalars)

    if padded != rows:
        out = out[:rows]
    return out.reshape(orig_shape), acc


class Layer2NoNormPallas:
    """Python-side state mirrors the torch module's buffers / attributes."""

    def __init__(self, weight, bias, eps=1e-12, steps=5000, start_delta=0.99):
        self.weight = weight
        self.bias = bias
        self.eps = float(eps)
        self.steps = steps
        self.delta = float(start_delta)
        self.final_delta = 1.0
        self.delta_step = (self.final_delta - self.delta) / steps
        self.mix_step = 1.0 / steps
        self.mix = 1.0
        self.accumulator = jnp.zeros((3,), jnp.float32)
        self.training = True
        # TODO(synk): schedule_callback variant not supported (host callback).

    def __call__(self, batch):
        mix = self.mix if self.training else 0.0
        delta = self.delta if self.training else 1.0
        out, acc = layer2nonorm_forward(
            batch, self.weight, self.bias, self.accumulator,
            eps=self.eps, mix=mix, delta=delta, training=self.training)
        if self.training:
            self.accumulator = acc
            self.mix = max(0.0, self.mix - self.mix_step)
            self.delta = min(self.final_delta, self.delta + self.delta_step)
        return out


# --------------------------- pure-JAX reference ------------------------------


def reference_forward(x, weight, bias, accumulator, *, eps, mix, delta, training):
    acc = accumulator.astype(jnp.float32)
    xf = x.astype(jnp.float32)
    if mix == 0.0 and delta == 1.0:
        bm = acc[0] / acc[2]
        bv = acc[1] / acc[2]
    else:
        bm = jnp.mean(xf, axis=-1, keepdims=True)
        bv = jnp.mean((xf - bm) ** 2, axis=-1, keepdims=True)
        if training:
            new_acc = jnp.stack([jnp.mean(bm), jnp.mean(bv), jnp.float32(1.0)])
            acc = new_acc + delta * (acc - new_acc)
        am = acc[0] / acc[2]
        av = acc[1] / acc[2]
        bm = am + mix * (bm - am)
        bv = av + mix * (bv - av)
    ret = (xf - bm) / jnp.sqrt(bv + eps)
    return (ret * weight + bias).astype(x.dtype), acc


# ------------------------------- main ----------------------------------------


if __name__ == "__main__":
    B, S, H = 2, 8, 128
    key = jax.random.PRNGKey(0)
    kx, kw, kb = jax.random.split(key, 3)

    x = jax.random.normal(kx, (B, S, H), jnp.float32) * 2.0 + 0.5
    # Deterministic synthetic LayerNorm params (shape = normalized_shape = (H,))
    weight = 1.0 + 0.02 * jax.random.normal(kw, (H,), jnp.float32)
    bias = 0.01 * jax.random.normal(kb, (H,), jnp.float32)

    module = Layer2NoNormPallas(weight, bias, eps=1e-12)

    # --- step 1: training, mix == 1.0 -> fused single-pass kernel ------------
    ref_out1, ref_acc1 = reference_forward(
        x, weight, bias, jnp.zeros((3,), jnp.float32),
        eps=1e-12, mix=1.0, delta=0.99, training=True)
    out1 = jax.block_until_ready(module(x))
    assert out1.shape == (B, S, H) and out1.dtype == x.dtype
    assert jnp.allclose(out1, ref_out1, atol=1e-5, rtol=1e-5), "fused output mismatch"
    assert jnp.allclose(module.accumulator, ref_acc1, atol=1e-6, rtol=1e-5), \
        "fused accumulator mismatch"

    # --- step 2: training, 0 < mix < 1 -> two-pass stats + lerp-normalize ----
    mix2, delta2 = module.mix, module.delta
    ref_out2, ref_acc2 = reference_forward(
        x, weight, bias, ref_acc1, eps=1e-12, mix=mix2, delta=delta2, training=True)
    out2 = jax.block_until_ready(module(x))
    assert jnp.allclose(out2, ref_out2, atol=1e-5, rtol=1e-5), "two-pass output mismatch"
    assert jnp.allclose(module.accumulator, ref_acc2, atol=1e-6, rtol=1e-5), \
        "two-pass accumulator mismatch"

    # --- step 3: eval (mix=0, delta=1) -> accumulator-only affine kernel -----
    module.training = False
    ref_out3, _ = reference_forward(
        x, weight, bias, module.accumulator,
        eps=1e-12, mix=0.0, delta=1.0, training=False)
    out3 = jax.block_until_ready(module(x))
    assert jnp.allclose(out3, ref_out3, atol=1e-5, rtol=1e-5), "eval output mismatch"

    print("KERNEL_OK")
</pallas_src>

<mosaic_0001>
module attributes {stable_mosaic.version = 11 : i64} {
  func.func @_fused_train_kernel(%arg0: i32, %arg1: memref<16x128xf32, #tpu.memory_space<vmem>>, %arg2: memref<1x128xf32, #tpu.memory_space<vmem>>, %arg3: memref<1x128xf32, #tpu.memory_space<vmem>>, %arg4: memref<16x128xf32, #tpu.memory_space<vmem>>, %arg5: memref<16x1xf32, #tpu.memory_space<vmem>>, %arg6: memref<16x1xf32, #tpu.memory_space<vmem>>) attributes {dimension_semantics = [#tpu.dimension_semantics<parallel>], iteration_bounds = array<i64: 1>, scalar_prefetch = 0 : i64, scratch_operands = 0 : i64, tpu.core_type = #tpu.core_type<tc>, window_params = [{transform_indices = @transform_0, window_bounds = array<i64: 16, 128>}, {pipeline_mode = #tpu.pipeline_mode<synchronous>, transform_indices = @transform_1, window_bounds = array<i64: 1, 128>}, {pipeline_mode = #tpu.pipeline_mode<synchronous>, transform_indices = @transform_2, window_bounds = array<i64: 1, 128>}, {transform_indices = @transform_3, window_bounds = array<i64: 16, 128>}, {transform_indices = @transform_4, window_bounds = array<i64: 16, 1>}, {transform_indices = @transform_5, window_bounds = array<i64: 16, 1>}]} {
    %c0 = arith.constant 0 : index
    %c0_0 = arith.constant 0 : index
    %0 = vector.load %arg1[%c0, %c0_0] : memref<16x128xf32, #tpu.memory_space<vmem>>, vector<16x128xf32>
    %cst = arith.constant dense<0.000000e+00> : vector<16xf32>
    %1 = vector.multi_reduction <add>, %0, %cst [1] : vector<16x128xf32> to vector<16xf32>
    %2 = vector.shape_cast %1 : vector<16xf32> to vector<16x1xf32>
    %cst_1 = arith.constant 1.280000e+02 : f32
    %3 = vector.broadcast %cst_1 : f32 to vector<16x1xf32>
    %4 = arith.divf %2, %3 : vector<16x1xf32>
    %5 = vector.broadcast %4 : vector<16x1xf32> to vector<16x128xf32>
    %6 = arith.subf %0, %5 : vector<16x128xf32>
    %7 = arith.mulf %6, %6 : vector<16x128xf32>
    %cst_2 = arith.constant dense<0.000000e+00> : vector<16xf32>
    %8 = vector.multi_reduction <add>, %7, %cst_2 [1] : vector<16x128xf32> to vector<16xf32>
    %9 = vector.shape_cast %8 : vector<16xf32> to vector<16x1xf32>
    %cst_3 = arith.constant 1.280000e+02 : f32
    %10 = vector.broadcast %cst_3 : f32 to vector<16x1xf32>
    %11 = arith.divf %9, %10 : vector<16x1xf32>
    %cst_4 = arith.constant 9.99999996E-13 : f32
    %12 = vector.broadcast %cst_4 : f32 to vector<16x1xf32>
    %13 = arith.addf %11, %12 : vector<16x1xf32>
    %14 = math.rsqrt %13 : vector<16x1xf32>
    %15 = vector.broadcast %14 : vector<16x1xf32> to vector<16x128xf32>
    %16 = arith.mulf %6, %15 : vector<16x128xf32>
    %c0_5 = arith.constant 0 : index
    %c0_6 = arith.constant 0 : index
    %17 = vector.load %arg2[%c0_5, %c0_6] : memref<1x128xf32, #tpu.memory_space<vmem>>, vector<1x128xf32>
    %18 = vector.broadcast %17 : vector<1x128xf32> to vector<16x128xf32>
    %19 = arith.mulf %16, %18 : vector<16x128xf32>
    %c0_7 = arith.constant 0 : index
    %c0_8 = arith.constant 0 : index
    %20 = vector.load %arg3[%c0_7, %c0_8] : memref<1x128xf32, #tpu.memory_space<vmem>>, vector<1x128xf32>
    %21 = vector.broadcast %20 : vector<1x128xf32> to vector<16x128xf32>
    %22 = arith.addf %19, %21 : vector<16x128xf32>
    %c0_9 = arith.constant 0 : index
    %c0_10 = arith.constant 0 : index
    %23 = vector.load %arg4[%c0_9, %c0_10] : memref<16x128xf32, #tpu.memory_space<vmem>>, vector<16x128xf32>
    tpu.vector_store %arg4[%c0_9, %c0_10], %22 {strides = array<i32>} : memref<16x128xf32, #tpu.memory_space<vmem>>, vector<16x128xf32>,
    %c0_11 = arith.constant 0 : index
    %c0_12 = arith.constant 0 : index
    %24 = vector.load %arg5[%c0_11, %c0_12] : memref<16x1xf32, #tpu.memory_space<vmem>>, vector<16x1xf32>
    tpu.vector_store %arg5[%c0_11, %c0_12], %4 {strides = array<i32>} : memref<16x1xf32, #tpu.memory_space<vmem>>, vector<16x1xf32>,
    %c0_13 = arith.constant 0 : index
    %c0_14 = arith.constant 0 : index
    %25 = vector.load %arg6[%c0_13, %c0_14] : memref<16x1xf32, #tpu.memory_space<vmem>>, vector<16x1xf32>
    tpu.vector_store %arg6[%c0_13, %c0_14], %11 {strides = array<i32>} : memref<16x1xf32, #tpu.memory_space<vmem>>, vector<16x1xf32>,
    return
  }
  func.func @transform_0(%arg0: i32) -> (i32, i32) {
    %c0_i32 = arith.constant 0 : i32
    %c0_i32_0 = arith.constant 0 : i32
    return %arg0, %c0_i32 : i32, i32
  }
  func.func @transform_1(%arg0: i32) -> (i32, i32) {
    %c0_i32 = arith.constant 0 : i32
    %c0_i32_0 = arith.constant 0 : i32
    %c0_i32_1 = arith.constant 0 : i32
    return %c0_i32, %c0_i32_0 : i32, i32
  }
  func.func @transform_2(%arg0: i32) -> (i32, i32) {
    %c0_i32 = arith.constant 0 : i32
    %c0_i32_0 = arith.constant 0 : i32
    %c0_i32_1 = arith.constant 0 : i32
    return %c0_i32, %c0_i32_0 : i32, i32
  }
  func.func @transform_3(%arg0: i32) -> (i32, i32) {
    %c0_i32 = arith.constant 0 : i32
    %c0_i32_0 = arith.constant 0 : i32
    return %arg0, %c0_i32 : i32, i32
  }
  func.func @transform_4(%arg0: i32) -> (i32, i32) {
    %c0_i32 = arith.constant 0 : i32
    %c0_i32_0 = arith.constant 0 : i32
    return %arg0, %c0_i32 : i32, i32
  }
  func.func @transform_5(%arg0: i32) -> (i32, i32) {
    %c0_i32 = arith.constant 0 : i32
    %c0_i32_0 = arith.constant 0 : i32
    return %arg0, %c0_i32 : i32, i32
  }
}

</mosaic_0001>

<llo_original>
// kernel: tpu_custom_call.1
$region0: #{tpu_custom_call.1}
  #allocation0 [shape = 'u32[]', space=smem, size = 0x4, offset = 0x4, fixed_abs, tag = 'smem constant byte address 0x4 - core index']
  #allocation1 [shape = 'u32[72,128]{1,0:T(1,128)}', space=vmem, size = 0x9000, scoped, tag = 'internal scratch']
  %s0 = inlined_call_operand.hbm [shape: f32[16,128], index: 0, kind: input, shape index: {}]
  %s1 = inlined_call_operand.hbm [shape: f32[1,128], index: 1, kind: input, shape index: {}]
  %s2 = inlined_call_operand.vmem [shape: f32[1,128], index: 2, kind: input, shape index: {}]
  %s3 = inlined_call_operand.hbm [shape: f32[16,128], index: 3, kind: output, shape index: {0}]
  %s4 = inlined_call_operand.vmem [shape: f32[16,1], index: 4, kind: output, shape index: {1}]
  %s5 = inlined_call_operand.vmem [shape: f32[16,1], index: 5, kind: output, shape index: {2}]
  %6 = xla_tuple %s3, %s4, %s5
  %s7 = sld [smem:[#allocation0]]
  $region46: #{tpu_custom_call.1} parent=0
    _
  %s9 = ssub.s32 1, %s7
  %s10 = scalar_select 0, %s9, %s7
  $region1: #{tpu_custom_call.1} parent=0
    #allocation2 [shape = 'u8[8192]{0}', space=vmem, size = 0x2000, scoped, tag = 'input window, operand 0, single buffered']
    #allocation3 [shape = 's32[1]{0}', space=sflag, size = 0x4, scoped, tag = 'scoped memory for tpu_custom_call.1']
    #allocation4 [shape = 's32[1]{0}', space=sflag, size = 0x4, scoped, tag = 'scoped memory for tpu_custom_call.1']
    #allocation5 [shape = 'u8[512]{0}', space=vmem, size = 0x400, scoped, tag = 'input window, operand 1, single buffered']
    #allocation6 [shape = 's32[1]{0}', space=sflag, size = 0x4, scoped, tag = 'scoped memory for tpu_custom_call.1']
    #allocation7 [shape = 'u8[8192]{0}', space=vmem, size = 0x2000, scoped, tag = 'output window, operand 0, single buffered']
    %11 = vsyncpa [#allocation3], 0
    %12 = vsyncpa [#allocation6], 0
    %13 = vsyncpa [#allocation4], 0
    // Predicated region
    $region2: #{tpu_custom_call.1} parent=1 // pred_check
      _
    $region3: #{tpu_custom_call.1} parent=1 // pred_check_branch
      %15 = sbr.rel (0) target = $region5
    $region4: #{tpu_custom_call.1} parent=1 // pred_region
      %17 = vsyncadd [#allocation3], 0
      %s18 = sshll.u32 %s0, 4
      %s19 = int_to_ptr.hbm [resolvable:$true] %s18
      %s20 = sshll.u32 [#allocation2], 4
      %s21 = int_to_ptr.vmem [resolvable:$true] %s20
      %26 = dma.hbm_to_vmem [thread:$0]  %s19, 256, %s21, [#allocation3], 128, 128, 8
    $region5: #{tpu_custom_call.1} parent=1 // pred_fallthru
      _
    // Predicated region
    $region6: #{tpu_custom_call.1} parent=1 // pred_check
      _
    $region7: #{tpu_custom_call.1} parent=1 // pred_check_branch
      %28 = sbr.rel (0) target = $region9
    $region8: #{tpu_custom_call.1} parent=1 // pred_region
      %30 = vsyncadd [#allocation6], 0
      %s32 = sshll.u32 %s1, 4
      %s33 = int_to_ptr.hbm [resolvable:$true] %s32
      %s34 = sshll.u32 [#allocation5], 4
      %s35 = int_to_ptr.vmem [resolvable:$true] %s34
      %37 = dma.hbm_to_vmem [thread:$0]  %s33, 16, %s35, [#allocation6]
    $region9: #{tpu_custom_call.1} parent=1 // pred_fallthru
      _
    // Predicated region
    $region10: #{tpu_custom_call.1} parent=1 // pred_check
      _
    $region11: #{tpu_custom_call.1} parent=1 // pred_check_branch
      %39 = sbr.rel (0) target = $region13
    $region12: #{tpu_custom_call.1} parent=1 // pred_region
      _
    $region13: #{tpu_custom_call.1} parent=1 // pred_fallthru
      _
    // Predicated region
    $region14: #{tpu_custom_call.1} parent=1 // pred_check
      _
    $region15: #{tpu_custom_call.1} parent=1 // pred_check_branch
      %41 = sbr.rel (0) target = $region17
    $region16: #{tpu_custom_call.1} parent=1 // pred_region
      %43 = dma.done [#allocation3], 256
    $region17: #{tpu_custom_call.1} parent=1 // pred_fallthru
      _
    // Predicated region
    $region18: #{tpu_custom_call.1} parent=1 // pred_check
      _
    $region19: #{tpu_custom_call.1} parent=1 // pred_check_branch
      %45 = sbr.rel (0) target = $region21
    $region20: #{tpu_custom_call.1} parent=1 // pred_region
      %47 = dma.done [#allocation6], 16
    $region21: #{tpu_custom_call.1} parent=1 // pred_fallthru
      _
    %v48 = vld [vmem:[#allocation2] sm:$0xff]
    %v49 = vld [vmem:[#allocation2 + $0x8] sm:$0xff]
    %50 = vadd.xlane.f32.xlu0 %v48
    %v51 = vpop.xlane.xlu0 %50
    %52 = vadd.xlane.f32.xlu0 %v49
    %v53 = vpop.xlane.xlu0 %52
    %v54 = vrcp.pop 128.0
    %v55 = vmul.f32 128.0, %v54
    %v56 = vsub.f32 1.0, %v55
    %v57 = vmul.f32 %v54, %v56
    %v58 = vadd.f32 %v54, %v57
    %vm59 = vweird.f32 %v54
    %v60 = vsel %vm59, %v54, %v58
    %v61 = vmul.f32 %v51, %v60
    %v62 = vmul.f32 %v53, %v60
    %v63 = vsub.f32 %v48, %v61
    %v64 = vsub.f32 %v49, %v62
    %v65 = vmul.f32 %v63, %v63
    %v66 = vmul.f32 %v64, %v64
    %67 = vadd.xlane.f32.xlu0 %v65
    %v68 = vpop.xlane.xlu0 %67
    %69 = vadd.xlane.f32.xlu0 %v66
    %v70 = vpop.xlane.xlu0 %69
    %v71 = vmul.f32 %v68, %v60
    %v72 = vmul.f32 %v70, %v60
    %v73 = vadd.f32 %v71, 1e-12
    %v74 = vadd.f32 %v72, 1e-12
    %v75 = vrsqrt.pop %v73
    %v76 = vmul.f32 %v75, %v73
    %v77 = vmul.f32 %v76, %v75
    %v78 = vmul.f32 0.5, %v77
    %v79 = vsub.f32 1.5, %v78
    %v80 = vmul.f32 %v75, %v79
    %vm81 = vweird.f32 %v73
    %vm82 = vweird.f32 %v75
    %vm83 = vmor %vm81, %vm82
    %v84 = vsel %vm83, %v75, %v80
    %v85 = vrsqrt.pop %v74
    %v86 = vmul.f32 %v85, %v74
    %v87 = vmul.f32 %v86, %v85
    %v88 = vmul.f32 0.5, %v87
    %v89 = vsub.f32 1.5, %v88
    %v90 = vmul.f32 %v85, %v89
    %vm91 = vweird.f32 %v74
    %vm92 = vweird.f32 %v85
    %vm93 = vmor %vm91, %vm92
    %v94 = vsel %vm93, %v85, %v90
    %v95 = vmul.f32 %v63, %v84
    %v96 = vmul.f32 %v64, %v94
    %v97 = vld [vmem:[#allocation5] sm:$0x1]
    %v99 = vperm.slane %v97, 0
    %v101 = vmul.f32 %v95, %v99
    %v102 = vmul.f32 %v96, %v99
    %v103 = vld [vmem:[%s2] sm:$0x1]
    %v105 = vperm.slane %v103, 0
    %v107 = vadd.f32 %v101, %v105
    %v108 = vadd.f32 %v102, %v105
    %109 = vst [vmem:[#allocation7] sm:$0xff] %v107
    %110 = vst [vmem:[#allocation7 + $0x8] sm:$0xff] %v108
    %vm111 = vcmask 7168
    %112 = vst.msk [vmem:[%s4] sm:$0xff] %vm111, %v61
    %113 = vst.msk [vmem:[%s4 + $0x8] sm:$0xff] %vm111, %v62
    %114 = vst.msk [vmem:[%s5] sm:$0xff] %vm111, %v71
    %115 = vst.msk [vmem:[%s5 + $0x8] sm:$0xff] %vm111, %v72
    // Predicated region
    $region22: #{tpu_custom_call.1} parent=1 // pred_check
      _
    $region23: #{tpu_custom_call.1} parent=1 // pred_check_branch
      %117 = sbr.rel (0) target = $region25
    $region24: #{tpu_custom_call.1} parent=1 // pred_region
      %119 = vsyncadd [#allocation4], 0
      %s120 = sshll.u32 [#allocation7], 4
      %s121 = int_to_ptr.vmem [resolvable:$true] %s120
      %s122 = sshll.u32 %s3, 4
      %s123 = int_to_ptr.hbm [resolvable:$true] %s122
      %128 = dma.vmem_to_hbm [thread:$0]  %s121, 256, %s123, [#allocation4], 128, 128, 8
    $region25: #{tpu_custom_call.1} parent=1 // pred_fallthru
      _
    // Predicated region
    $region26: #{tpu_custom_call.1} parent=1 // pred_check
      _
    $region27: #{tpu_custom_call.1} parent=1 // pred_check_branch
      %130 = sbr.rel (0) target = $region29
    $region28: #{tpu_custom_call.1} parent=1 // pred_region
      _
    $region29: #{tpu_custom_call.1} parent=1 // pred_fallthru
      _
    // Predicated region
    $region30: #{tpu_custom_call.1} parent=1 // pred_check
      _
    $region31: #{tpu_custom_call.1} parent=1 // pred_check_branch
      %132 = sbr.rel (0) target = $region33
    $region32: #{tpu_custom_call.1} parent=1 // pred_region
      _
    $region33: #{tpu_custom_call.1} parent=1 // pred_fallthru
      _
    // Predicated region
    $region34: #{tpu_custom_call.1} parent=1 // pred_check
      _
    $region35: #{tpu_custom_call.1} parent=1 // pred_check_branch
      %134 = sbr.rel (0) target = $region37
    $region36: #{tpu_custom_call.1} parent=1 // pred_region
      %136 = dma.done [#allocation4], 256
    $region37: #{tpu_custom_call.1} parent=1 // pred_fallthru
      _
    // Predicated region
    $region38: #{tpu_custom_call.1} parent=1 // pred_check
      _
    $region39: #{tpu_custom_call.1} parent=1 // pred_check_branch
      %138 = sbr.rel (0) target = $region41
    $region40: #{tpu_custom_call.1} parent=1 // pred_region
      _
    $region41: #{tpu_custom_call.1} parent=1 // pred_fallthru
      _
    // Predicated region
    $region42: #{tpu_custom_call.1} parent=1 // pred_check
      _
    $region43: #{tpu_custom_call.1} parent=1 // pred_check_branch
      %140 = sbr.rel (0) target = $region45
    $region44: #{tpu_custom_call.1} parent=1 // pred_region
      _
    $region45: #{tpu_custom_call.1} parent=1 // pred_fallthru
      _
    %141 = vsyncpa [#allocation3], 1
    %142 = vsyncpa [#allocation6], 1
    %143 = vsyncpa [#allocation4], 1

</llo_original>
